<compile_context>
chip_gen: v7x
topology: tpu7x:2x2x1
jax: 0.10.0
libtpu: 0.0.40
codegen_flags: <defaults>
</compile_context>

<pallas_src>
import functools

import jax
import jax.numpy as jnp
from jax import lax
from jax.experimental import pallas as pl
from jax.experimental.pallas import tpu as pltpu


def _round_up(v, m):
    return ((v + m - 1) // m) * m


def _pool_kernel(x_ref, max_ref, avg_ref, max_acc, sum_acc, *, tl, length, need_mask):
    """Grid = (N-tiles, L-tiles). L (last axis) is the reduction axis."""
    jl = pl.program_id(1)

    @pl.when(jl == 0)
    def _init():
        max_acc[...] = jnp.full_like(max_acc, -jnp.inf)
        sum_acc[...] = jnp.zeros_like(sum_acc)

    # Upcast once; all accumulation in f32 (VPU elementwise, no per-step XLU reduce).
    x = x_ref[...].astype(jnp.float32)

    if need_mask:
        # Last L tile is partial: mask out-of-range lanes (-inf for max, 0 for sum).
        lane = lax.broadcasted_iota(jnp.int32, x.shape, 2)
        valid = (jl * tl + lane) < length
        x_max = jnp.where(valid, x, -jnp.inf)
        x_sum = jnp.where(valid, x, 0.0)
    else:
        x_max = x
        x_sum = x

    max_acc[...] = jnp.maximum(max_acc[...], x_max)
    sum_acc[...] = sum_acc[...] + x_sum

    @pl.when(jl == pl.num_programs(1) - 1)
    def _finalize():
        mx = jnp.max(max_acc[...], axis=-1)                      # single XLU reduce
        av = jnp.sum(sum_acc[...], axis=-1) * (1.0 / length)     # hoisted 1/L constant
        max_ref[...] = mx.astype(max_ref.dtype)
        avg_ref[...] = av.astype(avg_ref.dtype)


_TARGET_TILE_BYTES = 2 << 20  # ~2 MiB per input tile (before double-buffering)


def adaptive_concat_pool1d(x, sz=None, *, tn=None, tl=None):
    """Pallas equivalent of AdaptiveConcatPool1d.forward for sz in (None, 1)."""
    sz = sz or 1
    if sz != 1:
        # TODO(synk): general adaptive pooling bins (sz > 1) not implemented; module default is sz=1.
        raise NotImplementedError("only sz=1 is supported")

    n, c, l = x.shape
    itemsize = jnp.dtype(x.dtype).itemsize

    # ---- tile selection: L is the lane/reduction axis, N is the parallel axis ----
    if tn is None:
        tn = n if n <= 8 else 8                      # multiple of 8 (or full N)
    if tl is None:
        per_len_bytes = max(1, tn * c * itemsize)
        tl_budget = max(1, _TARGET_TILE_BYTES // per_len_bytes)
        if l <= tl_budget:
            tl = l                                   # full length -> single L step
        else:
            tl = max(128, (tl_budget // 128) * 128)  # multiple of 128
        # If the whole length fits, spend leftover budget on more batch rows.
        if tl == l and n > tn:
            grow = _TARGET_TILE_BYTES // max(1, c * l * itemsize)
            if grow >= n:
                tn = n
            elif grow > tn:
                tn = max(8, (grow // 8) * 8)
    # TODO(synk): for very large C (C * tl tile >> a few MiB) the C axis should also be tiled.

    grid = (pl.cdiv(n, tn), pl.cdiv(l, tl))
    need_mask = (l % tl) != 0

    # ---- VMEM budget: double-buffered input tile + two f32 accumulators + outputs ----
    sub = 8 * max(1, 4 // itemsize)
    in_tile = tn * _round_up(c, sub) * _round_up(tl, 128) * itemsize
    acc_bytes = 2 * tn * _round_up(c, 8) * _round_up(tl, 128) * 4
    out_bytes = 2 * 2 * _round_up(tn, 8) * _round_up(c, 128) * itemsize
    vmem_limit = int(min(max(2 * in_tile + acc_bytes + out_bytes + (4 << 20), 16 << 20),
                         48 << 20))  # stay well under v7x's 64 MiB physical VMEM

    kernel = functools.partial(_pool_kernel, tl=tl, length=l, need_mask=need_mask)

    mx, av = pl.pallas_call(
        kernel,
        out_shape=(
            jax.ShapeDtypeStruct((n, c), x.dtype),   # max-pooled, lane-dense
            jax.ShapeDtypeStruct((n, c), x.dtype),   # avg-pooled, lane-dense
        ),
        grid_spec=pltpu.PrefetchScalarGridSpec(
            num_scalar_prefetch=0,
            grid=grid,
            in_specs=[pl.BlockSpec((tn, c, tl), lambda i, j: (i, 0, j))],
            out_specs=[
                pl.BlockSpec((tn, c), lambda i, j: (i, 0)),  # resident across L axis
                pl.BlockSpec((tn, c), lambda i, j: (i, 0)),
            ],
            scratch_shapes=[
                pltpu.VMEM((tn, c, tl), jnp.float32),  # running max
                pltpu.VMEM((tn, c, tl), jnp.float32),  # running sum
            ],
        ),
        compiler_params=pltpu.CompilerParams(
            dimension_semantics=("parallel", "arbitrary"),
            vmem_limit_bytes=vmem_limit,
        ),
    )(x)

    # torch.cat([mp(x), ap(x)], dim=1) -> (N, 2*C, 1); cheap layout plumbing in JAX.
    return jnp.concatenate([mx, av], axis=1)[:, :, None]


if __name__ == "__main__":
    # Small NCL input consistent with a 1D pooling module: batch=2, channels=4, length=16.
    x = jax.random.normal(jax.random.PRNGKey(0), (2, 4, 16), dtype=jnp.float32)
    out = jax.block_until_ready(adaptive_concat_pool1d(x))
    ref = jnp.concatenate(
        [jnp.max(x, axis=-1, keepdims=True), jnp.mean(x, axis=-1, keepdims=True)], axis=1
    )
    assert out.shape == (2, 8, 1), out.shape
    assert jnp.allclose(out, ref, atol=1e-5, rtol=1e-5), "mismatch vs reference (small)"

    # Second check exercising the tiled + masked reduction path (L not a multiple of tl).
    x2 = jax.random.normal(jax.random.PRNGKey(0), (16, 8, 300), dtype=jnp.float32)
    out2 = jax.block_until_ready(adaptive_concat_pool1d(x2, tn=8, tl=128))
    ref2 = jnp.concatenate(
        [jnp.max(x2, axis=-1, keepdims=True), jnp.mean(x2, axis=-1, keepdims=True)], axis=1
    )
    assert out2.shape == (16, 16, 1), out2.shape
    assert jnp.allclose(out2, ref2, atol=1e-5, rtol=1e-5), "mismatch vs reference (tiled)"

    print("KERNEL_OK")
</pallas_src>

<mosaic_0001>
module attributes {stable_mosaic.version = 11 : i64} {
  func.func @_pool_kernel(%arg0: i32, %arg1: i32, %arg2: memref<2x4x16xf32, #tpu.memory_space<vmem>>, %arg3: memref<2x4xf32, #tpu.memory_space<vmem>>, %arg4: memref<2x4xf32, #tpu.memory_space<vmem>>, %arg5: memref<2x4x16xf32, #tpu.memory_space<vmem>>, %arg6: memref<2x4x16xf32, #tpu.memory_space<vmem>>) attributes {dimension_semantics = [#tpu.dimension_semantics<parallel>, #tpu.dimension_semantics<arbitrary>], iteration_bounds = array<i64: 1, 1>, scalar_prefetch = 0 : i64, scratch_operands = 2 : i64, tpu.core_type = #tpu.core_type<tc>, window_params = [{transform_indices = @transform_0, window_bounds = array<i64: 2, 4, 16>}, {transform_indices = @transform_1, window_bounds = array<i64: 2, 4>}, {transform_indices = @transform_2, window_bounds = array<i64: 2, 4>}]} {
    %c0_i32 = arith.constant 0 : i32
    %0 = arith.cmpi eq, %arg1, %c0_i32 : i32
    %1 = arith.extui %0 : i1 to i32
    %c0_i32_0 = arith.constant 0 : i32
    %2 = arith.cmpi ne, %1, %c0_i32_0 : i32
    scf.if %2 {
      %cst = arith.constant 0xFF800000 : f32
      %13 = vector.broadcast %cst : f32 to vector<2x4x16xf32>
      %c0_17 = arith.constant 0 : index
      %c0_18 = arith.constant 0 : index
      %c0_19 = arith.constant 0 : index
      %14 = vector.load %arg5[%c0_17, %c0_18, %c0_19] : memref<2x4x16xf32, #tpu.memory_space<vmem>>, vector<2x4x16xf32>
      tpu.vector_store %arg5[%c0_17, %c0_18, %c0_19], %13 {strides = array<i32>} : memref<2x4x16xf32, #tpu.memory_space<vmem>>, vector<2x4x16xf32>,
      %cst_20 = arith.constant 0.000000e+00 : f32
      %15 = vector.broadcast %cst_20 : f32 to vector<2x4x16xf32>
      %c0_21 = arith.constant 0 : index
      %c0_22 = arith.constant 0 : index
      %c0_23 = arith.constant 0 : index
      %16 = vector.load %arg6[%c0_21, %c0_22, %c0_23] : memref<2x4x16xf32, #tpu.memory_space<vmem>>, vector<2x4x16xf32>
      tpu.vector_store %arg6[%c0_21, %c0_22, %c0_23], %15 {strides = array<i32>} : memref<2x4x16xf32, #tpu.memory_space<vmem>>, vector<2x4x16xf32>,
    } else {
    }
    %c0 = arith.constant 0 : index
    %c0_1 = arith.constant 0 : index
    %c0_2 = arith.constant 0 : index
    %3 = vector.load %arg2[%c0, %c0_1, %c0_2] : memref<2x4x16xf32, #tpu.memory_space<vmem>>, vector<2x4x16xf32>
    %c0_3 = arith.constant 0 : index
    %c0_4 = arith.constant 0 : index
    %c0_5 = arith.constant 0 : index
    %4 = vector.load %arg5[%c0_3, %c0_4, %c0_5] : memref<2x4x16xf32, #tpu.memory_space<vmem>>, vector<2x4x16xf32>
    %5 = arith.maximumf %4, %3 : vector<2x4x16xf32>
    %c0_6 = arith.constant 0 : index
    %c0_7 = arith.constant 0 : index
    %c0_8 = arith.constant 0 : index
    %6 = vector.load %arg5[%c0_6, %c0_7, %c0_8] : memref<2x4x16xf32, #tpu.memory_space<vmem>>, vector<2x4x16xf32>
    tpu.vector_store %arg5[%c0_6, %c0_7, %c0_8], %5 {strides = array<i32>} : memref<2x4x16xf32, #tpu.memory_space<vmem>>, vector<2x4x16xf32>,
    %c0_9 = arith.constant 0 : index
    %c0_10 = arith.constant 0 : index
    %c0_11 = arith.constant 0 : index
    %7 = vector.load %arg6[%c0_9, %c0_10, %c0_11] : memref<2x4x16xf32, #tpu.memory_space<vmem>>, vector<2x4x16xf32>
    %8 = arith.addf %7, %3 : vector<2x4x16xf32>
    %c0_12 = arith.constant 0 : index
    %c0_13 = arith.constant 0 : index
    %c0_14 = arith.constant 0 : index
    %9 = vector.load %arg6[%c0_12, %c0_13, %c0_14] : memref<2x4x16xf32, #tpu.memory_space<vmem>>, vector<2x4x16xf32>
    tpu.vector_store %arg6[%c0_12, %c0_13, %c0_14], %8 {strides = array<i32>} : memref<2x4x16xf32, #tpu.memory_space<vmem>>, vector<2x4x16xf32>,
    %c0_i32_15 = arith.constant 0 : i32
    %10 = arith.cmpi eq, %arg1, %c0_i32_15 : i32
    %11 = arith.extui %10 : i1 to i32
    %c0_i32_16 = arith.constant 0 : i32
    %12 = arith.cmpi ne, %11, %c0_i32_16 : i32
    scf.if %12 {
      %c0_17 = arith.constant 0 : index
      %c0_18 = arith.constant 0 : index
      %c0_19 = arith.constant 0 : index
      %13 = vector.load %arg5[%c0_17, %c0_18, %c0_19] : memref<2x4x16xf32, #tpu.memory_space<vmem>>, vector<2x4x16xf32>
      %cst = arith.constant dense<0xFF800000> : vector<2x4xf32>
      %14 = vector.multi_reduction <maximumf>, %13, %cst [2] : vector<2x4x16xf32> to vector<2x4xf32>
      %c0_20 = arith.constant 0 : index
      %c0_21 = arith.constant 0 : index
      %c0_22 = arith.constant 0 : index
      %15 = vector.load %arg6[%c0_20, %c0_21, %c0_22] : memref<2x4x16xf32, #tpu.memory_space<vmem>>, vector<2x4x16xf32>
      %cst_23 = arith.constant dense<0.000000e+00> : vector<2x4xf32>
      %16 = vector.multi_reduction <add>, %15, %cst_23 [2] : vector<2x4x16xf32> to vector<2x4xf32>
      %cst_24 = arith.constant 6.250000e-02 : f32
      %17 = vector.broadcast %cst_24 : f32 to vector<2x4xf32>
      %18 = arith.mulf %16, %17 : vector<2x4xf32>
      %c0_25 = arith.constant 0 : index
      %c0_26 = arith.constant 0 : index
      %19 = vector.load %arg3[%c0_25, %c0_26] : memref<2x4xf32, #tpu.memory_space<vmem>>, vector<2x4xf32>
      tpu.vector_store %arg3[%c0_25, %c0_26], %14 {strides = array<i32>} : memref<2x4xf32, #tpu.memory_space<vmem>>, vector<2x4xf32>,
      %c0_27 = arith.constant 0 : index
      %c0_28 = arith.constant 0 : index
      %20 = vector.load %arg4[%c0_27, %c0_28] : memref<2x4xf32, #tpu.memory_space<vmem>>, vector<2x4xf32>
      tpu.vector_store %arg4[%c0_27, %c0_28], %18 {strides = array<i32>} : memref<2x4xf32, #tpu.memory_space<vmem>>, vector<2x4xf32>,
    } else {
    }
    return
  }
  func.func @transform_0(%arg0: i32, %arg1: i32) -> (i32, i32, i32) {
    %c0_i32 = arith.constant 0 : i32
    %c0_i32_0 = arith.constant 0 : i32
    return %arg0, %c0_i32, %arg1 : i32, i32, i32
  }
  func.func @transform_1(%arg0: i32, %arg1: i32) -> (i32, i32) {
    %c0_i32 = arith.constant 0 : i32
    %c0_i32_0 = arith.constant 0 : i32
    return %arg0, %c0_i32 : i32, i32
  }
  func.func @transform_2(%arg0: i32, %arg1: i32) -> (i32, i32) {
    %c0_i32 = arith.constant 0 : i32
    %c0_i32_0 = arith.constant 0 : i32
    return %arg0, %c0_i32 : i32, i32
  }
}

</mosaic_0001>

<llo_original>
// kernel: tpu_custom_call.1
$region0: #{tpu_custom_call.1}
  #allocation0 [shape = 'u32[]', space=smem, size = 0x4, offset = 0x4, fixed_abs, tag = 'smem constant byte address 0x4 - core index']
  #allocation1 [shape = 'u32[144,128]{1,0:T(1,128)}', space=vmem, size = 0x12000, scoped, tag = 'internal scratch']
  #allocation2 [shape = 'f32[2,4,16]{2,1,0:T(4,128)}', space=vmem, size = 0x1000, scoped, tag = 'scratch operand']
  #allocation3 [shape = 'f32[2,4,16]{2,1,0:T(4,128)}', space=vmem, size = 0x1000, scoped, tag = 'scratch operand']
  %s0 = inlined_call_operand.hbm [shape: f32[2,4,16], index: 0, kind: input, shape index: {}]
  %s1 = inlined_call_operand.hbm [shape: f32[2,4], index: 1, kind: output, shape index: {0}]
  %s2 = inlined_call_operand.hbm [shape: f32[2,4], index: 2, kind: output, shape index: {1}]
  %3 = xla_tuple %s1, %s2
  %s4 = sld [smem:[#allocation0]]
  $region34: #{tpu_custom_call.1} parent=0
    _
  %s6 = ssub.s32 1, %s4
  %s7 = scalar_select 0, %s6, %s4
  $region1: #{tpu_custom_call.1} parent=0
    #allocation4 [shape = 'u8[4096]{0}', space=vmem, size = 0x1000, scoped, tag = 'input window, operand 0, single buffered']
    #allocation5 [shape = 's32[1]{0}', space=sflag, size = 0x4, scoped, tag = 'scoped memory for tpu_custom_call.1']
    #allocation6 [shape = 's32[1]{0}', space=sflag, size = 0x4, scoped, tag = 'scoped memory for tpu_custom_call.1']
    #allocation7 [shape = 'u8[1024]{0}', space=vmem, size = 0x400, scoped, tag = 'output window, operand 0, single buffered']
    #allocation8 [shape = 'u8[1024]{0}', space=vmem, size = 0x400, scoped, tag = 'output window, operand 1, single buffered']
    #allocation9 [shape = 's32[1]{0}', space=sflag, size = 0x4, scoped, tag = 'scoped memory for tpu_custom_call.1']
    %8 = vsyncpa [#allocation5], 0
    %9 = vsyncpa [#allocation6], 0
    %10 = vsyncpa [#allocation9], 0
    // Predicated region
    $region2: #{tpu_custom_call.1} parent=1 // pred_check
      _
    $region3: #{tpu_custom_call.1} parent=1 // pred_check_branch
      %12 = sbr.rel (0) target = $region5
    $region4: #{tpu_custom_call.1} parent=1 // pred_region
      %s14 = ssub.s32 128, 128
      %15 = vsyncadd [#allocation5], %s14
      %s16 = sshll.u32 [#allocation4], 4
      %s17 = int_to_ptr.vmem [resolvable:$true] %s16
      %22 = dma.hbm_to_vmem [thread:$0]  %s0, 128, %s17, [#allocation5], 64, 64, 4
    $region5: #{tpu_custom_call.1} parent=1 // pred_fallthru
      _
    // Predicated region
    $region6: #{tpu_custom_call.1} parent=1 // pred_check
      _
    $region7: #{tpu_custom_call.1} parent=1 // pred_check_branch
      %24 = sbr.rel (0) target = $region9
    $region8: #{tpu_custom_call.1} parent=1 // pred_region
      %25 = dma.done [#allocation5], 128
    $region9: #{tpu_custom_call.1} parent=1 // pred_fallthru
      _
    %p26 = scmp.eq.s32.totalorder 0, 0
    // Predicated region
    $region10: #{tpu_custom_call.1} parent=1 // pred_check
      %p27 = pneg %p26
    $region11: #{tpu_custom_call.1} parent=1 // pred_check_branch
      %29 = sbr.rel (%p27) target = $region13
    $region12: #{tpu_custom_call.1} parent=1 // pred_region
      %vm30 = vcmask 125952
      %31 = vst.msk [vmem:[#allocation2] sm:$0xf] %vm30, -inf
      %32 = vst.msk [vmem:[#allocation2 + $0x4] sm:$0xf] %vm30, -inf
      %33 = vst.msk [vmem:[#allocation3] sm:$0xf] %vm30, 0.0
      %34 = vst.msk [vmem:[#allocation3 + $0x4] sm:$0xf] %vm30, 0.0
    $region13: #{tpu_custom_call.1} parent=1 // pred_fallthru
      _
    %v35 = vld [vmem:[#allocation4] sm:$0xf]
    %v36 = vld [vmem:[#allocation4 + $0x4] sm:$0xf]
    %v37 = vld [vmem:[#allocation2] sm:$0xf]
    %v38 = vld [vmem:[#allocation2 + $0x4] sm:$0xf]
    %v39 = vmax.f32 %v37, %v35
    %v40 = vmax.f32 %v38, %v36
    %vm41 = vcmask 125952
    %42 = vst.msk [vmem:[#allocation2] sm:$0xf] %vm41, %v39
    %43 = vst.msk [vmem:[#allocation2 + $0x4] sm:$0xf] %vm41, %v40
    %v44 = vld [vmem:[#allocation3] sm:$0xf]
    %v45 = vld [vmem:[#allocation3 + $0x4] sm:$0xf]
    %v46 = vadd.f32 %v44, %v35
    %v47 = vadd.f32 %v45, %v36
    %48 = vst.msk [vmem:[#allocation3] sm:$0xf] %vm41, %v46
    %49 = vst.msk [vmem:[#allocation3 + $0x4] sm:$0xf] %vm41, %v47
    // Predicated region
    $region14: #{tpu_custom_call.1} parent=1 // pred_check
      %p50 = pneg %p26
    $region15: #{tpu_custom_call.1} parent=1 // pred_check_branch
      %52 = sbr.rel (%p50) target = $region17
    $region16: #{tpu_custom_call.1} parent=1 // pred_region
      %v53 = vld [vmem:[#allocation2] sm:$0xf]
      %v54 = vld [vmem:[#allocation2 + $0x4] sm:$0xf]
      %v55 = vsel %vm41, %v53, -inf
      %56 = vmax.xlane.f32.xlu0 %v55
      %v57 = vpop.xlane.xlu0 %56
      %v58 = vsel %vm41, %v54, -inf
      %59 = vmax.xlane.f32.xlu0 %v58
      %v60 = vpop.xlane.xlu0 %59
      %v61 = vld [vmem:[#allocation3] sm:$0xf]
      %v62 = vld [vmem:[#allocation3 + $0x4] sm:$0xf]
      %v63 = vsel %vm41, %v61, 0.0
      %64 = vadd.xlane.f32.xlu0 %v63
      %v65 = vpop.xlane.xlu0 %64
      %v66 = vsel %vm41, %v62, 0.0
      %67 = vadd.xlane.f32.xlu0 %v66
      %v68 = vpop.xlane.xlu0 %67
      %v69 = vmul.f32 %v65, 0.0625
      %v70 = vmul.f32 %v68, 0.0625
      %v73 = vlaneseq
      %v74 = vand.u32 %v73, 127
      %v75 = vlaneseq
      %v76 = vshrl.u32 %v75, 7
      %v77 = vsub.s32 %v74, %v76
      %v78 = vrot.slane %v57, %v77
      %v79 = vlaneseq
      %v80 = vshrl.u32 %v79, 7
      %v81 = vsub.s32 %v74, %v80
      %v82 = vrot.slane %v60, %v81
      %vm83 = vcmask 1041409
      %v84 = vsel %vm83, %v82, %v78
      %vm86 = vcmask 25600
      %87 = vst.msk [vmem:[#allocation7] sm:$0x3] %vm86, %v84
      %v90 = vlaneseq
      %v91 = vshrl.u32 %v90, 7
      %v92 = vsub.s32 %v74, %v91
      %v93 = vrot.slane %v69, %v92
      %v94 = vlaneseq
      %v95 = vshrl.u32 %v94, 7
      %v96 = vsub.s32 %v74, %v95
      %v97 = vrot.slane %v70, %v96
      %v98 = vsel %vm83, %v97, %v93
      %100 = vst.msk [vmem:[#allocation8] sm:$0x3] %vm86, %v98
    $region17: #{tpu_custom_call.1} parent=1 // pred_fallthru
      _
    // Predicated region
    $region18: #{tpu_custom_call.1} parent=1 // pred_check
      _
    $region19: #{tpu_custom_call.1} parent=1 // pred_check_branch
      %102 = sbr.rel (0) target = $region21
    $region20: #{tpu_custom_call.1} parent=1 // pred_region
      %s104 = ssub.s32 32, 32
      %105 = vsyncadd [#allocation6], %s104
      %s107 = sshll.u32 [#allocation7], 4
      %s108 = int_to_ptr.vmem [resolvable:$true] %s107
      %110 = dma.vmem_to_hbm [thread:$0]  %s108, 32, %s1, [#allocation6]
    $region21: #{tpu_custom_call.1} parent=1 // pred_fallthru
      _
    // Predicated region
    $region22: #{tpu_custom_call.1} parent=1 // pred_check
      _
    $region23: #{tpu_custom_call.1} parent=1 // pred_check_branch
      %112 = sbr.rel (0) target = $region25
    $region24: #{tpu_custom_call.1} parent=1 // pred_region
      %s114 = ssub.s32 32, 32
      %115 = vsyncadd [#allocation9], %s114
      %s117 = sshll.u32 [#allocation8], 4
      %s118 = int_to_ptr.vmem [resolvable:$true] %s117
      %120 = dma.vmem_to_hbm [thread:$0]  %s118, 32, %s2, [#allocation9]
    $region25: #{tpu_custom_call.1} parent=1 // pred_fallthru
      _
    // Predicated region
    $region26: #{tpu_custom_call.1} parent=1 // pred_check
      _
    $region27: #{tpu_custom_call.1} parent=1 // pred_check_branch
      %122 = sbr.rel (0) target = $region29
    $region28: #{tpu_custom_call.1} parent=1 // pred_region
      %123 = dma.done [#allocation6], 32
    $region29: #{tpu_custom_call.1} parent=1 // pred_fallthru
      _
    // Predicated region
    $region30: #{tpu_custom_call.1} parent=1 // pred_check
      _
    $region31: #{tpu_custom_call.1} parent=1 // pred_check_branch
      %125 = sbr.rel (0) target = $region33
    $region32: #{tpu_custom_call.1} parent=1 // pred_region
      %126 = dma.done [#allocation9], 32
    $region33: #{tpu_custom_call.1} parent=1 // pred_fallthru
      _
    %127 = vsyncpa [#allocation5], 1
    %128 = vsyncpa [#allocation6], 1
    %129 = vsyncpa [#allocation9], 1

</llo_original>
